<compile_context>
chip_gen: v6e
topology: v6e:2x2x1
jax: 0.10.0
libtpu: 0.0.40
codegen_flags: <defaults>
</compile_context>

<pallas_src>
import functools

import jax
import jax.numpy as jnp
from jax.experimental import pallas as pl
from jax.experimental.pallas import tpu as pltpu


def _fpm_matmul_kernel(wdyn_ref, feat_ref, out_ref):
    # wdyn_ref: (FC, C_in) bf16 -- per-batch attention-scaled reduction weight
    # feat_ref: (C_in, T_HW) bf16 -- one HW tile of one batch element
    # out_ref : (FC, T_HW) f32
    out = jnp.dot(wdyn_ref[...], feat_ref[...],
                  preferred_element_type=jnp.float32)
    # reduction_conv.activate -> ReLU (ConvModule default act_cfg)
    out_ref[...] = jnp.maximum(out, 0.0)


@functools.partial(jax.jit,
                   static_argnames=("feat_channels", "stacked_convs", "hw_tile"))
def feature_projection(feat_nchw, params, *, feat_channels, stacked_convs,
                       hw_tile=2048):
    B, C_in, H, W = feat_nchw.shape
    FC, S = feat_channels, stacked_convs
    assert C_in == FC * S
    hw = H * W

    feat_f32 = feat_nchw.astype(jnp.float32)

    # ---- layer-attention MLP (tiny; hoisted out of the hot Pallas loop) ----
    # adaptive_avg_pool2d -> mean over the TRUE (unpadded) spatial extent.
    avg = jnp.mean(feat_f32, axis=(2, 3))                                  # (B, C_in)
    h1 = jnp.maximum(avg @ params["la_w1"].T + params["la_b1"][:, 0], 0.0)  # (B, hidden)
    attn = jax.nn.sigmoid(h1 @ params["la_w2"].T + params["la_b2"][:, 0])   # (B, S)

    # Fold the gate into the small weight instead of the big activation:
    #   dynW @ feat == (attn-scaled Wred) @ feat
    wdyn = (attn[:, None, :, None] *
            params["red_w"].reshape(1, FC, S, FC)).reshape(B, FC, C_in)     # (B, FC, C_in)

    # ---- pick HW tile; pad HW so tiles are lane-dense multiples of 128 ----
    hw_128 = ((hw + 127) // 128) * 128
    t_hw = min(int(hw_tile), hw_128)
    t_hw = ((t_hw + 127) // 128) * 128
    hw_pad = ((hw + t_hw - 1) // t_hw) * t_hw
    n_hw = hw_pad // t_hw

    feat_flat = feat_f32.reshape(B, C_in, hw)
    if hw_pad != hw:
        feat_flat = jnp.pad(feat_flat, ((0, 0), (0, 0), (0, hw_pad - hw)))

    # bf16 streamed operands (halves HBM traffic, 2x MXU), f32 accumulation.
    feat_bf16 = feat_flat.astype(jnp.bfloat16)
    wdyn_bf16 = wdyn.astype(jnp.bfloat16)

    # Explicit, modest VMEM budget: double-buffered feat + out tiles + weight,
    # with headroom; capped so it is safe on v7x's smaller VMEM.
    tile_bytes = (2 * C_in * t_hw * 2) + (2 * FC * t_hw * 4) + (2 * FC * C_in * 2)
    vmem_limit = int(min(max(4 * tile_bytes, 16 * 1024 * 1024), 64 * 1024 * 1024))

    out_flat = pl.pallas_call(
        _fpm_matmul_kernel,
        out_shape=jax.ShapeDtypeStruct((B, FC, hw_pad), jnp.float32),
        grid=(B, n_hw),
        in_specs=[
            # Per-batch small weight; constant across the inner HW axis so it
            # stays resident (no re-DMA between consecutive j steps).
            pl.BlockSpec((None, FC, C_in), lambda b, j: (b, 0, 0)),
            # Streamed feature tile, HW on the lane (last) axis.
            pl.BlockSpec((None, C_in, t_hw), lambda b, j: (b, 0, j)),
        ],
        out_specs=pl.BlockSpec((None, FC, t_hw), lambda b, j: (b, 0, j)),
        compiler_params=pltpu.CompilerParams(
            dimension_semantics=("parallel", "parallel"),
            vmem_limit_bytes=vmem_limit),
    )(wdyn_bf16, feat_bf16)

    return out_flat[:, :, :hw].reshape(B, FC, H, W)


def reference_jax(feat_nchw, params, *, feat_channels, stacked_convs):
    """Pure-JAX (f32) re-implementation of the PyTorch forward for validation."""
    B, C_in, H, W = feat_nchw.shape
    FC, S = feat_channels, stacked_convs
    feat = feat_nchw.astype(jnp.float32)

    avg = jnp.mean(feat, axis=(2, 3))                                       # (B, C_in)
    h1 = jnp.maximum(avg @ params["la_w1"].T + params["la_b1"][:, 0], 0.0)
    attn = jax.nn.sigmoid(h1 @ params["la_w2"].T + params["la_b2"][:, 0])   # (B, S)

    wred = params["red_w"].reshape(1, FC, S, FC)
    dyn_w = (attn.reshape(B, 1, S, 1) * wred).reshape(B, FC, C_in)
    out = jnp.einsum("bfc,bcp->bfp", dyn_w, feat.reshape(B, C_in, H * W))
    return jnp.maximum(out, 0.0).reshape(B, FC, H, W)


def init_params(key, feat_channels, stacked_convs, la_down_rate):
    in_channels = feat_channels * stacked_convs
    hidden = in_channels // la_down_rate
    k1, k2, k3 = jax.random.split(key, 3)
    # init_weights(): layer_attention convs ~ N(0, 0.001), reduction conv ~ N(0, 0.01),
    # biases zero. (1x1 conv weights stored as 2-D matrices.)
    return {
        "la_w1": (0.001 * jax.random.normal(k1, (hidden, in_channels))).astype(jnp.float32),
        "la_b1": jnp.zeros((hidden, 1), jnp.float32),
        "la_w2": (0.001 * jax.random.normal(k2, (stacked_convs, hidden))).astype(jnp.float32),
        "la_b2": jnp.zeros((stacked_convs, 1), jnp.float32),
        "red_w": (0.01 * jax.random.normal(k3, (feat_channels, in_channels))).astype(jnp.float32),
    }


if __name__ == "__main__":
    feat_channels = 16
    stacked_convs = 4
    la_down_rate = 8          # in_channels=64 -> hidden=8 at this small test size
    B, H, W = 2, 16, 16
    in_channels = feat_channels * stacked_convs

    key = jax.random.PRNGKey(0)
    kx, kp = jax.random.split(key)
    x = jax.random.normal(kx, (B, in_channels, H, W), dtype=jnp.float32)
    params = init_params(kp, feat_channels, stacked_convs, la_down_rate)

    out = feature_projection(x, params,
                             feat_channels=feat_channels,
                             stacked_convs=stacked_convs)
    out = jax.block_until_ready(out)

    ref = reference_jax(x, params,
                        feat_channels=feat_channels,
                        stacked_convs=stacked_convs)
    assert out.shape == (B, feat_channels, H, W)
    # bf16 streamed operands with f32 accumulation -> small drift vs f32 reference.
    assert jnp.allclose(out, ref, atol=2e-3, rtol=2e-2), "mismatch vs JAX reference"

    print("KERNEL_OK")
</pallas_src>

<mosaic_0001>
module attributes {stable_mosaic.version = 11 : i64} {
  func.func @_fpm_matmul_kernel(%arg0: i32, %arg1: i32, %arg2: memref<1x16x64xbf16, #tpu.memory_space<vmem>>, %arg3: memref<1x64x256xbf16, #tpu.memory_space<vmem>>, %arg4: memref<1x16x256xf32, #tpu.memory_space<vmem>>) attributes {dimension_semantics = [#tpu.dimension_semantics<parallel>, #tpu.dimension_semantics<parallel>], iteration_bounds = array<i64: 2, 1>, scalar_prefetch = 0 : i64, scratch_operands = 0 : i64, tpu.core_type = #tpu.core_type<tc>, window_params = [{transform_indices = @transform_0, window_bounds = array<i64: 1, 16, 64>}, {transform_indices = @transform_1, window_bounds = array<i64: 1, 64, 256>}, {transform_indices = @transform_2, window_bounds = array<i64: 1, 16, 256>}]} {
    %c0 = arith.constant 0 : index
    %c0_0 = arith.constant 0 : index
    %c0_1 = arith.constant 0 : index
    %0 = vector.load %arg2[%c0, %c0_0, %c0_1] : memref<1x16x64xbf16, #tpu.memory_space<vmem>>, vector<1x16x64xbf16>
    %1 = vector.shape_cast %0 : vector<1x16x64xbf16> to vector<16x64xbf16>
    %c0_2 = arith.constant 0 : index
    %c0_3 = arith.constant 0 : index
    %c0_4 = arith.constant 0 : index
    %2 = vector.load %arg3[%c0_2, %c0_3, %c0_4] : memref<1x64x256xbf16, #tpu.memory_space<vmem>>, vector<1x64x256xbf16>
    %3 = vector.shape_cast %2 : vector<1x64x256xbf16> to vector<64x256xbf16>
    %cst = arith.constant dense<0.000000e+00> : vector<16x256xf32>
    %4 = tpu.matmul %1, %3, %cst {dimension_numbers = #tpu.dot_dimension_numbers<[1], [0], [0], [1], [0, 0, 1, 1], [], []>} : vector<16x64xbf16>, vector<64x256xbf16>, vector<16x256xf32> -> vector<16x256xf32>
    %cst_5 = arith.constant 0.000000e+00 : f32
    %5 = vector.broadcast %cst_5 : f32 to vector<16x256xf32>
    %6 = arith.maximumf %4, %5 : vector<16x256xf32>
    %c0_6 = arith.constant 0 : index
    %c0_7 = arith.constant 0 : index
    %c0_8 = arith.constant 0 : index
    %7 = vector.load %arg4[%c0_6, %c0_7, %c0_8] : memref<1x16x256xf32, #tpu.memory_space<vmem>>, vector<1x16x256xf32>
    %8 = vector.shape_cast %7 : vector<1x16x256xf32> to vector<16x256xf32>
    %9 = vector.shape_cast %6 : vector<16x256xf32> to vector<1x16x256xf32>
    tpu.vector_store %arg4[%c0_6, %c0_7, %c0_8], %9 {strides = array<i32>} : memref<1x16x256xf32, #tpu.memory_space<vmem>>, vector<1x16x256xf32>,
    return
  }
  func.func @transform_0(%arg0: i32, %arg1: i32) -> (i32, i32, i32) {
    %c0_i32 = arith.constant 0 : i32
    %c0_i32_0 = arith.constant 0 : i32
    %c0_i32_1 = arith.constant 0 : i32
    return %arg0, %c0_i32, %c0_i32_0 : i32, i32, i32
  }
  func.func @transform_1(%arg0: i32, %arg1: i32) -> (i32, i32, i32) {
    %c0_i32 = arith.constant 0 : i32
    %c0_i32_0 = arith.constant 0 : i32
    return %arg0, %c0_i32, %arg1 : i32, i32, i32
  }
  func.func @transform_2(%arg0: i32, %arg1: i32) -> (i32, i32, i32) {
    %c0_i32 = arith.constant 0 : i32
    %c0_i32_0 = arith.constant 0 : i32
    return %arg0, %c0_i32, %arg1 : i32, i32, i32
  }
}

</mosaic_0001>

<llo_original>
// kernel: feature_projection.1
$region0: #{feature_projection.1}
  #allocation0 [shape = 'u32[]', space=smem, size = 0x4, offset = 0x4, fixed_abs, tag = 'smem constant byte address 0x4 - core index']
  #allocation1 [shape = 'u32[144,128]{1,0:T(1,128)}', space=vmem, size = 0x12000, scoped, tag = 'internal scratch']
  %s0 = inlined_call_operand.vmem [shape: bf16[2,16,64], index: 0, kind: input, shape index: {}]
  %s1 = inlined_call_operand.vmem [shape: bf16[2,64,256], index: 1, kind: input, shape index: {}]
  %s2 = inlined_call_operand.vmem [shape: f32[2,16,256], index: 2, kind: output, shape index: {}]
  %s3 = sld [smem:[#allocation0]]
  $region41: #{feature_projection.1} parent=0
    _
  %s5 = ssub.s32 1, %s3
  %s6 = scalar_select 0, %s5, %s3
  loop: start=0, step=1, limit=4
  $region2: #{feature_projection.1} parent=0 // loop_pre_header
    _
  $region3: #{feature_projection.1} parent=0 // loop_header
    %s8 = sphi 0, %s12
    %p9 = scmp.ge.s32.totalorder %s8, 4
    %s15 = sphi 0, %s27
    %s16 = sphi 0, %s23
    %s17 = sphi 0, %s15
    %s18 = sphi 0, %s16
    %s19 = sphi 0, %s17
    %s20 = sphi 0, %s18
    %s30 = sphi 0, %s32
    %s33 = sphi 0, %s30
    %s34 = sphi 0, %s33
    %s50 = sphi 0, %s34
    %s58 = sphi 0, %s60
    %s61 = sphi 0, %s58
    %s62 = sphi 0, %s61
    %s78 = sphi 0, %s62
    %s86 = sphi 0, %s88
    %s89 = sphi 0, %s86
    %s90 = sphi 0, %s89
    %s106 = sphi 0, %s90
  $region4: #{feature_projection.1} parent=0 // loop_header_branch
    %11 = sbr.rel (%p9) target = $region8
  $region5: #{feature_projection.1} parent=0 // loop_body
    %s13 = ssub.s32 %s8, 1
    %s14 = ssub.s32 %s8, 2
    %s21 = sadd.s32 1, %s16
    %p22 = scmp.ge.s32.totalorder %s21, 1
    %s23 = scalar_select %p22, 0, %s21
    %s24 = sadd.s32 1, %s15
    %s25 = scalar_select %p22, %s24, %s15
    %p26 = scmp.ge.s32.totalorder %s25, 2
    %s27 = scalar_select %p26, 0, %s25
    %s28 = ssub.s32 %s15, %s27
    %p29 = scmp.eq.s32.totalorder %s28, 0
    %s31 = sadd.s32 %s30, 1
    %s32 = scalar_select %p29, %s30, %s31
    %p35 = pneg %p29
    %p36 = scmp.eq.s32.totalorder %s8, 1
    %p37 = por %p35, %p36
    %p38 = scmp.ne.s32.totalorder %s30, %s33
    %p39 = scmp.eq.s32.totalorder %s8, 0
    %p40 = por %p38, %p39
    %p41 = scmp.ne.s32.totalorder %s30, %s33
    %p42 = scmp.eq.s32.totalorder %s13, 1
    %p43 = por %p41, %p42
    %p44 = scmp.ne.s32.totalorder %s33, %s34
    %p45 = scmp.eq.s32.totalorder %s13, 0
    %p46 = por %p44, %p45
    %p47 = scmp.ne.s32.totalorder %s33, %s34
    %p48 = scmp.eq.s32.totalorder %s14, 1
    %p49 = por %p47, %p48
    %p51 = scmp.ne.s32.totalorder %s34, %s50
    %p52 = scmp.eq.s32.totalorder %s14, 0
    %p53 = por %p51, %p52
    %s54 = ssub.s32 %s15, %s27
    %s55 = ssub.s32 %s16, %s23
    %s56 = sor.u32 %s54, %s55
    %p57 = scmp.eq.s32.totalorder %s56, 0
    %s59 = sadd.s32 %s58, 1
    %s60 = scalar_select %p57, %s58, %s59
    %p63 = pneg %p57
    %p64 = scmp.eq.s32.totalorder %s8, 1
    %p65 = por %p63, %p64
    %p66 = scmp.ne.s32.totalorder %s58, %s61
    %p67 = scmp.eq.s32.totalorder %s8, 0
    %p68 = por %p66, %p67
    %p69 = scmp.ne.s32.totalorder %s58, %s61
    %p70 = scmp.eq.s32.totalorder %s13, 1
    %p71 = por %p69, %p70
    %p72 = scmp.ne.s32.totalorder %s61, %s62
    %p73 = scmp.eq.s32.totalorder %s13, 0
    %p74 = por %p72, %p73
    %p75 = scmp.ne.s32.totalorder %s61, %s62
    %p76 = scmp.eq.s32.totalorder %s14, 1
    %p77 = por %p75, %p76
    %p79 = scmp.ne.s32.totalorder %s62, %s78
    %p80 = scmp.eq.s32.totalorder %s14, 0
    %p81 = por %p79, %p80
    %s82 = ssub.s32 %s15, %s27
    %s83 = ssub.s32 %s16, %s23
    %s84 = sor.u32 %s82, %s83
    %p85 = scmp.eq.s32.totalorder %s84, 0
    %s87 = sadd.s32 %s86, 1
    %s88 = scalar_select %p85, %s86, %s87
    %p91 = pneg %p85
    %p92 = scmp.eq.s32.totalorder %s8, 1
    %p93 = por %p91, %p92
    %p94 = scmp.ne.s32.totalorder %s86, %s89
    %p95 = scmp.eq.s32.totalorder %s8, 0
    %p96 = por %p94, %p95
    %p97 = scmp.ne.s32.totalorder %s86, %s89
    %p98 = scmp.eq.s32.totalorder %s13, 1
    %p99 = por %p97, %p98
    %p100 = scmp.ne.s32.totalorder %s89, %s90
    %p101 = scmp.eq.s32.totalorder %s13, 0
    %p102 = por %p100, %p101
    %p103 = scmp.ne.s32.totalorder %s89, %s90
    %p104 = scmp.eq.s32.totalorder %s14, 1
    %p105 = por %p103, %p104
    %p107 = scmp.ne.s32.totalorder %s90, %s106
    %p108 = scmp.eq.s32.totalorder %s14, 0
    %p109 = por %p107, %p108
    %p110 = scmp.le.s32.totalorder 1, %s8
    %p111 = scmp.lt.s32.totalorder %s8, 3
    %p112 = pnand %p110, %p111
    %p113 = pneg %p112
    // Predicated region
    $region9: #{feature_projection.1} parent=5 // pred_check
      _
    $region10: #{feature_projection.1} parent=5 // pred_check_branch
      %115 = sbr.rel (%p112) target = $region12
    $region11: #{feature_projection.1} parent=5 // pred_region
      %s116 = ssub.s32 %s8, 1
    $region12: #{feature_projection.1} parent=5 // pred_fallthru
      _
    %p117 = scmp.lt.s32.totalorder %s8, 2
    // Predicated region
    $region13: #{feature_projection.1} parent=5 // pred_check
      %p118 = pneg %p117
    $region14: #{feature_projection.1} parent=5 // pred_check_branch
      %120 = sbr.rel (%p118) target = $region16
    $region15: #{feature_projection.1} parent=5 // pred_region
      // Predicated region
      $region17: #{feature_projection.1} parent=15 // pred_check
        %p121 = pneg %p40
      $region18: #{feature_projection.1} parent=15 // pred_check_branch
        %123 = sbr.rel (%p121) target = $region20
      $region19: #{feature_projection.1} parent=15 // pred_region
        %p124 = scmp.lt.s32.totalorder %s15, 1
        %s125 = scalar_select %p124, %s15, 1
        %s126 = smul.addr %s125, 2
        %s127 = smul.addr %s126, 4
        %s128 = scalar_lea.vmem %s0, %s127
      $region20: #{feature_projection.1} parent=15 // pred_fallthru
        _
      // Predicated region
      $region21: #{feature_projection.1} parent=15 // pred_check
        %p129 = pneg %p68
      $region22: #{feature_projection.1} parent=15 // pred_check_branch
        %131 = sbr.rel (%p129) target = $region24
      $region23: #{feature_projection.1} parent=15 // pred_region
        %s132 = smul.u32 2, %s16
        %p133 = scmp.lt.s32.totalorder %s15, 1
        %s134 = scalar_select %p133, %s15, 1
        %p135 = scmp.lt.s32.totalorder %s132, 1
        %s136 = scalar_select %p135, %s132, 1
        %s137 = smul.addr %s134, 16
        %s138 = sadd.s32 %s136, %s137
        %s139 = smul.addr %s138, 4
        %s140 = scalar_lea.vmem %s1, %s139
        %s141 = smul.u32 2, %s16
      $region24: #{feature_projection.1} parent=15 // pred_fallthru
        _
    $region16: #{feature_projection.1} parent=5 // pred_fallthru
      _
    %p142 = scmp.le.s32.totalorder 1, %s8
    %p143 = scmp.lt.s32.totalorder %s8, 3
    %p144 = pnand %p142, %p143
    %p145 = pneg %p144
    // Predicated region
    $region25: #{feature_projection.1} parent=5 // pred_check
      _
    $region26: #{feature_projection.1} parent=5 // pred_check_branch
      %147 = sbr.rel (%p144) target = $region28
    $region27: #{feature_projection.1} parent=5 // pred_region
      %s148 = ssub.s32 %s8, 1
      %p149 = scmp.lt.s32.totalorder %s17, 1
      %s150 = scalar_select %p149, %s17, 1
      %s151 = smul.addr %s150, 2
      %s152 = smul.addr %s151, 4
      %s153 = scalar_lea.vmem %s0, %s152
      %p154 = pneg %p46
      %p155 = pneg %p43
      %s156 = smul.u32 2, %s18
      %p157 = scmp.lt.s32.totalorder %s17, 1
      %s158 = scalar_select %p157, %s17, 1
      %p159 = scmp.lt.s32.totalorder %s156, 1
      %s160 = scalar_select %p159, %s156, 1
      %s161 = smul.addr %s158, 16
      %s162 = sadd.s32 %s160, %s161
      %s163 = smul.addr %s162, 4
      %s164 = scalar_lea.vmem %s1, %s163
      %p165 = pneg %p74
      %p166 = pneg %p71
      %p167 = pneg %p102
      %p168 = pneg %p99
      %s169 = smul.u32 2, %s18
      %p170 = scmp.lt.s32.totalorder %s17, 1
      %s171 = scalar_select %p170, %s17, 1
      %p172 = scmp.lt.s32.totalorder %s169, 1
      %s173 = scalar_select %p172, %s169, 1
      %s174 = smul.addr %s171, 4
      %s175 = sadd.s32 %s173, %s174
      %s176 = smul.addr %s175, 8
      %s177 = scalar_lea.vmem %s2, %s176
      %p178 = scmp.lt.s32.totalorder %s17, 1
      %s179 = scalar_select %p178, %s17, 1
      %s180 = smul.addr %s179, 2
      %s181 = smul.addr %s180, 4
      %s182 = scalar_lea.vmem %s0, %s181
      %s183 = smul.u32 2, %s18
      %p184 = scmp.lt.s32.totalorder %s17, 1
      %s185 = scalar_select %p184, %s17, 1
      %p186 = scmp.lt.s32.totalorder %s183, 1
      %s187 = scalar_select %p186, %s183, 1
      %s188 = smul.addr %s185, 16
      %s189 = sadd.s32 %s187, %s188
      %s190 = smul.addr %s189, 4
      %s191 = scalar_lea.vmem %s1, %s190
      %s192 = smul.u32 2, %s18
      %s193 = smul.u32 2, %s18
      %p194 = scmp.lt.s32.totalorder %s17, 1
      %s195 = scalar_select %p194, %s17, 1
      %p196 = scmp.lt.s32.totalorder %s193, 1
      %s197 = scalar_select %p196, %s193, 1
      %s198 = smul.addr %s195, 4
      %s199 = sadd.s32 %s197, %s198
      %s200 = smul.addr %s199, 8
      %s201 = scalar_lea.vmem %s2, %s200
      %s202 = smul.u32 2, %s18
      %v204 = vld [vmem:[%s182] sm:$0xf]
      %v205 = vld [vmem:[%s182 + $0x4] sm:$0xf]
      %v206 = vld [vmem:[%s191] sm:$0xff]
      %v207 = vld [vmem:[%s191 + $0x8] sm:$0xff]
      %v208 = vld [vmem:[%s191 + $0x10] sm:$0xff]
      %v209 = vld [vmem:[%s191 + $0x18] sm:$0xff]
      %v210 = vld [vmem:[%s191 + $0x20] sm:$0xff]
      %v211 = vld [vmem:[%s191 + $0x28] sm:$0xff]
      %v212 = vld [vmem:[%s191 + $0x30] sm:$0xff]
      %v213 = vld [vmem:[%s191 + $0x38] sm:$0xff]
      %v216 = vunpack.c.l.b16 %v204
      %v217 = vunpack.c.l.b16 %v205
      %v218 = vpack.c.b16 %v217, %v216
      %v227 = vunpack.c.l.b16 %v206
      %v228 = vunpack.c.h.b16 %v206
      %v229 = vunpack.c.l.b16 %v207
      %v230 = vunpack.c.h.b16 %v207
      %v231 = vunpack.c.l.b16 %v208
      %v232 = vunpack.c.h.b16 %v208
      %v233 = vunpack.c.l.b16 %v209
      %v234 = vunpack.c.h.b16 %v209
      %v235 = vunpack.c.l.b16 %v210
      %v236 = vunpack.c.h.b16 %v210
      %v237 = vunpack.c.l.b16 %v211
      %v238 = vunpack.c.h.b16 %v211
      %v239 = vunpack.c.l.b16 %v212
      %v240 = vunpack.c.h.b16 %v212
      %v241 = vunpack.c.l.b16 %v213
      %v242 = vunpack.c.h.b16 %v213
      %v243 = vpack.c.b16 %v229, %v227
      %v244 = vpack.c.b16 %v230, %v228
      %v245 = vpack.c.b16 %v233, %v231
      %v246 = vpack.c.b16 %v234, %v232
      %v247 = vpack.c.b16 %v237, %v235
      %v248 = vpack.c.b16 %v238, %v236
      %v249 = vpack.c.b16 %v241, %v239
      %v250 = vpack.c.b16 %v242, %v240
      %vm259 = vcmask 523264
      %v261 = vsel %vm259, %v218, 0
      %263 = vmatprep.subr.bf16.mxu0 0
      %264 = vmatpush1.bf16.msra.mxu0 0
      %265 = vmatprep.subr.bf16.mxu0 0
      %266 = vmatpush1.bf16.msra.mxu0 0
      %267 = vmatprep.subr.bf16.mxu0 0
      %268 = vmatpush1.bf16.msra.mxu0 0
      %269 = vmatprep.subr.bf16.mxu0 0
      %270 = vmatpush1.bf16.msra.mxu0 0
      %271 = vmatprep.subr.bf16.mxu0 %v250
      %272 = vmatpush1.bf16.msra.mxu0 %v249
      %273 = vmatprep.subr.bf16.mxu0 %v248
      %274 = vmatpush1.bf16.msra.mxu0 %v247
      %275 = vmatprep.subr.bf16.mxu0 %v246
      %276 = vmatpush1.bf16.msra.mxu0 %v245
      %277 = vmatprep.subr.bf16.mxu0 %v244
      %278 = vmatpush1.bf16.msra.mxu0 %v243
      %279 = vmatprep.subr.bf16.mxu0 0
      %280 = vmatpush2.bf16.msra.mxu0 0
      %281 = vmatprep.subr.bf16.mxu0 0
      %282 = vmatpush2.bf16.msra.mxu0 0
      %283 = vmatprep.subr.bf16.mxu0 0
      %284 = vmatpush2.bf16.msra.mxu0 0
      %285 = vmatprep.subr.bf16.mxu0 0
      %286 = vmatpush2.bf16.msra.mxu0 0
      %287 = vmatprep.subr.bf16.mxu0 0
      %288 = vmatpush2.bf16.msra.mxu0 0
      %289 = vmatprep.subr.bf16.mxu0 0
      %290 = vmatpush2.bf16.msra.mxu0 0
      %291 = vmatprep.subr.bf16.mxu0 0
      %292 = vmatpush2.bf16.msra.mxu0 0
      %293 = vmatprep.subr.bf16.mxu0 0
      %294 = vmatpush2.bf16.msra.mxu0 0
      %295 = vmatprep.mubr.bf16.mxu0 0
      %296 = vmatmul.mubr.bf16.gmra.mxu0 %v261
      %v297 = vpop.f32.mrf.mxu0
      %v298 = vadd.f32 0.0, %v297
      %v299 = vpop.f32.mrf.mxu0
      %v300 = vadd.f32 0.0, %v299
      %v301 = vpop.f32.mrf.mxu0
      %v302 = vadd.f32 0.0, %v301
      %v303 = vpop.f32.mrf.mxu0
      %v304 = vadd.f32 0.0, %v303
      %305 = vdwg.mxu0
      %v306 = vmax.f32 %v298, 0.0
      %v307 = vmax.f32 %v300, 0.0
      %v308 = vmax.f32 %v302, 0.0
      %v309 = vmax.f32 %v304, 0.0
      %310 = vst [vmem:[%s201] sm:$0xff] %v306
      %311 = vst [vmem:[%s201 + $0x8] sm:$0xff] %v307
      %312 = vst [vmem:[%s201 + $0x10] sm:$0xff] %v308
      %313 = vst [vmem:[%s201 + $0x18] sm:$0xff] %v309
      %s314 = smul.u32 2, %s18
      %p315 = scmp.lt.s32.totalorder %s17, 1
      %s316 = scalar_select %p315, %s17, 1
      %p317 = scmp.lt.s32.totalorder %s314, 1
      %s318 = scalar_select %p317, %s314, 1
      %s319 = smul.addr %s316, 4
      %s320 = sadd.s32 %s318, %s319
      %s321 = smul.addr %s320, 8
      %s322 = scalar_lea.vmem %s2, %s321
      // Predicated region
      $region29: #{feature_projection.1} parent=27 // pred_check
        %p323 = pneg %p99
      $region30: #{feature_projection.1} parent=27 // pred_check_branch
        %325 = sbr.rel (%p323) target = $region32
      $region31: #{feature_projection.1} parent=27 // pred_region
        %s326 = smul.u32 2, %s18
      $region32: #{feature_projection.1} parent=27 // pred_fallthru
        _
    $region28: #{feature_projection.1} parent=5 // pred_fallthru
      _
    %p327 = scmp.le.s32.totalorder 2, %s8
    // Predicated region
    $region33: #{feature_projection.1} parent=5 // pred_check
      %p328 = pneg %p327
    $region34: #{feature_projection.1} parent=5 // pred_check_branch
      %330 = sbr.rel (%p328) target = $region36
    $region35: #{feature_projection.1} parent=5 // pred_region
      %s331 = ssub.s32 %s8, 2
      // Predicated region
      $region37: #{feature_projection.1} parent=35 // pred_check
        %p332 = pneg %p105
      $region38: #{feature_projection.1} parent=35 // pred_check_branch
        %334 = sbr.rel (%p332) target = $region40
      $region39: #{feature_projection.1} parent=35 // pred_region
        %s335 = smul.u32 2, %s20
        %p336 = scmp.lt.s32.totalorder %s19, 1
        %s337 = scalar_select %p336, %s19, 1
        %p338 = scmp.lt.s32.totalorder %s335, 1
        %s339 = scalar_select %p338, %s335, 1
        %s340 = smul.addr %s337, 4
        %s341 = sadd.s32 %s339, %s340
        %s342 = smul.addr %s341, 8
        %s343 = scalar_lea.vmem %s2, %s342
      $region40: #{feature_projection.1} parent=35 // pred_fallthru
        _
    $region36: #{feature_projection.1} parent=5 // pred_fallthru
      _
  $region6: #{feature_projection.1} parent=0 // loop_footer
    %s12 = sadd.s32 1, %s8
  $region7: #{feature_projection.1} parent=0 // loop_footer_branch
    %7 = sbr.rel target = $region3
  $region8: #{feature_projection.1} parent=0 // loop_exit
    _

</llo_original>
